<compile_context>
chip_gen: v5e
topology: v5e:2x2
jax: 0.10.0
libtpu: 0.0.40
codegen_flags: <defaults>
</compile_context>

<pallas_src>
import math

import jax
import jax.numpy as jnp
from jax.experimental import pallas as pl
from jax.experimental.pallas import tpu as pltpu


def _patch_embed_kernel(x_ref, pos_ref, w1_ref, t1_ref, w2_ref, t2_ref, o_ref):
    # x_ref  : (tile_m, F)   rows = flattened (batch, channel) locations
    # pos_ref: (tile_m, F)   positional encodings, repeating every C rows (resident)
    # w1_ref : (F, H1)       BN1 scale folded in        t1_ref: (1, H1) shift
    # w2_ref : (H1, E)       BN2 scale folded in        t2_ref: (1, E)  shift
    # o_ref  : (tile_m, E)
    x = x_ref[...] + pos_ref[...]                                  # fused pos add
    h = jnp.dot(x, w1_ref[...], preferred_element_type=jnp.float32)  # 1x1 conv stage 1
    h = jnp.maximum(h + t1_ref[...], 0.0)                          # BN1 shift + ReLU
    y = jnp.dot(h, w2_ref[...], preferred_element_type=jnp.float32)  # 1x1 conv stage 2
    o_ref[...] = jnp.maximum(y + t2_ref[...], 0.0).astype(o_ref.dtype)  # BN2 shift + ReLU


def _lcm(a, b):
    return a * b // math.gcd(a, b)


def _round_up(x, m):
    return ((x + m - 1) // m) * m


def modified_patch_embedding_2d(x, params, *, eps=1e-5, max_rows_target=8192):
    """x: (B, 1, C, F) float32 (PyTorch NCHW-like input). Returns (B, C, E)."""
    B, one, C, F = x.shape
    assert one == 1
    w1, b1 = params["w1"], params["b1"]          # (F, H1), (H1,)
    w2, b2 = params["w2"], params["b2"]          # (H1, E), (E,)
    H1, E = w1.shape[1], w2.shape[1]

    # Fold BN (inference mode) + conv bias into the weights / per-feature shifts.
    s1 = params["gamma1"] / jnp.sqrt(params["var1"] + eps)
    t1 = (b1 - params["mean1"]) * s1 + params["beta1"]
    s2 = params["gamma2"] / jnp.sqrt(params["var2"] + eps)
    t2 = (b2 - params["mean2"]) * s2 + params["beta2"]
    w1f = w1 * s1[None, :]                       # (F, H1)  BN1 scale folded
    w2f = w2 * s2[None, :]                       # (H1, E)  BN2 scale folded

    # Natural layout: rows = flattened (batch, channel) locations. Free reshape.
    M = B * C
    x2 = x.reshape(M, F)

    # Row tile: multiple of lcm(8, C) so (a) sublane alignment holds and
    # (b) the positional encodings repeat with a fixed phase inside every tile.
    base = _lcm(8, C)
    tile_cap = max(base, (max_rows_target // base) * base)
    n_tiles = pl.cdiv(M, tile_cap)
    if n_tiles == 1 and M >= max(2 * base, 2048):
        n_tiles = 2                              # >=2 parallel steps -> both v7x TCs busy
    tile_m = _round_up(pl.cdiv(M, n_tiles), base)
    grid = (pl.cdiv(M, tile_m),)                 # last block may be partial; Pallas masks it

    # Small VMEM-resident pos block (tile_m rows, repeats every C) — constant
    # index_map, so it is fetched once and never re-streamed.
    pos_tile = jnp.tile(params["pos"].reshape(C, F), (tile_m // C, 1))

    cost = pl.CostEstimate(
        flops=2 * M * (F * H1 + H1 * E),
        transcendentals=0,
        bytes_accessed=4 * (M * F + M * E + tile_m * F + F * H1 + H1 * E + H1 + E),
    )

    out2 = pl.pallas_call(
        _patch_embed_kernel,
        out_shape=jax.ShapeDtypeStruct((M, E), x.dtype),
        grid=grid,
        in_specs=[
            pl.BlockSpec((tile_m, F), lambda i: (i, 0)),   # x rows tile (streamed)
            pl.BlockSpec((tile_m, F), lambda i: (0, 0)),   # pos block   (resident)
            pl.BlockSpec((F, H1), lambda i: (0, 0)),       # w1 (folded, resident)
            pl.BlockSpec((1, H1), lambda i: (0, 0)),       # shift1      (resident)
            pl.BlockSpec((H1, E), lambda i: (0, 0)),       # w2 (folded, resident)
            pl.BlockSpec((1, E), lambda i: (0, 0)),        # shift2      (resident)
        ],
        out_specs=pl.BlockSpec((tile_m, E), lambda i: (i, 0)),
        compiler_params=pltpu.CompilerParams(
            dimension_semantics=("parallel",),
            vmem_limit_bytes=32 * 1024 * 1024,
        ),
        cost_estimate=cost,
    )(x2, pos_tile, w1f, t1.reshape(1, H1), w2f, t2.reshape(1, E))

    # Output is already in (B*C, E) row-major order -> free reshape, no transpose.
    return out2.reshape(B, C, E)


def _reference_forward(x, params, eps=1e-5):
    """Pure-JAX replica of the PyTorch forward (eval-mode BN)."""
    h = x[:, 0] + params["pos"][None, :, :]                      # (B, C, F)
    y = jnp.einsum("bcf,fh->bch", h, params["w1"]) + params["b1"]
    y = (y - params["mean1"]) / jnp.sqrt(params["var1"] + eps) * params["gamma1"] + params["beta1"]
    y = jnp.maximum(y, 0.0)
    y = jnp.einsum("bch,he->bce", y, params["w2"]) + params["b2"]
    y = (y - params["mean2"]) / jnp.sqrt(params["var2"] + eps) * params["gamma2"] + params["beta2"]
    y = jnp.maximum(y, 0.0)
    return y                                                     # (B, C, E)


if __name__ == "__main__":
    # Small shapes consistent with the module: emb_size=32, num_channels=16, num_freq_bands=8
    B, C, F, E = 4, 16, 8, 32
    H1 = E // 2

    key = jax.random.PRNGKey(0)
    ks = jax.random.split(key, 14)
    x = jax.random.normal(ks[0], (B, 1, C, F), jnp.float32)

    params = {
        "pos":    jax.random.normal(ks[1], (C, F), jnp.float32),
        # Conv2d(F, H1, 1x1) weight is (H1, F, 1, 1) in PyTorch; stored here as (F, H1).
        "w1":     0.2 * jax.random.normal(ks[2], (F, H1), jnp.float32),
        "b1":     0.1 * jax.random.normal(ks[3], (H1,), jnp.float32),
        "gamma1": 1.0 + 0.1 * jax.random.normal(ks[4], (H1,), jnp.float32),
        "beta1":  0.1 * jax.random.normal(ks[5], (H1,), jnp.float32),
        "mean1":  0.1 * jax.random.normal(ks[6], (H1,), jnp.float32),
        "var1":   1.0 + 0.1 * jax.random.uniform(ks[7], (H1,), jnp.float32),
        "w2":     0.2 * jax.random.normal(ks[8], (H1, E), jnp.float32),
        "b2":     0.1 * jax.random.normal(ks[9], (E,), jnp.float32),
        "gamma2": 1.0 + 0.1 * jax.random.normal(ks[10], (E,), jnp.float32),
        "beta2":  0.1 * jax.random.normal(ks[11], (E,), jnp.float32),
        "mean2":  0.1 * jax.random.normal(ks[12], (E,), jnp.float32),
        "var2":   1.0 + 0.1 * jax.random.uniform(ks[13], (E,), jnp.float32),
    }

    out = modified_patch_embedding_2d(x, params)
    out = jax.block_until_ready(out)

    ref = _reference_forward(x, params)
    assert out.shape == (B, C, E), out.shape
    assert jnp.allclose(out, ref, atol=1e-4, rtol=1e-4), float(jnp.max(jnp.abs(out - ref)))

    print("KERNEL_OK")
</pallas_src>

<mosaic_0001>
module attributes {stable_mosaic.version = 11 : i64} {
  func.func @_patch_embed_kernel(%arg0: i32, %arg1: memref<64x8xf32, #tpu.memory_space<vmem>>, %arg2: memref<64x8xf32, #tpu.memory_space<vmem>>, %arg3: memref<8x16xf32, #tpu.memory_space<vmem>>, %arg4: memref<1x16xf32, #tpu.memory_space<vmem>>, %arg5: memref<16x32xf32, #tpu.memory_space<vmem>>, %arg6: memref<1x32xf32, #tpu.memory_space<vmem>>, %arg7: memref<64x32xf32, #tpu.memory_space<vmem>>) attributes {dimension_semantics = [#tpu.dimension_semantics<parallel>], iteration_bounds = array<i64: 1>, scalar_prefetch = 0 : i64, scratch_operands = 0 : i64, tpu.core_type = #tpu.core_type<tc>, window_params = [{transform_indices = @transform_0, window_bounds = array<i64: 64, 8>}, {pipeline_mode = #tpu.pipeline_mode<synchronous>, transform_indices = @transform_1, window_bounds = array<i64: 64, 8>}, {pipeline_mode = #tpu.pipeline_mode<synchronous>, transform_indices = @transform_2, window_bounds = array<i64: 8, 16>}, {pipeline_mode = #tpu.pipeline_mode<synchronous>, transform_indices = @transform_3, window_bounds = array<i64: 1, 16>}, {pipeline_mode = #tpu.pipeline_mode<synchronous>, transform_indices = @transform_4, window_bounds = array<i64: 16, 32>}, {pipeline_mode = #tpu.pipeline_mode<synchronous>, transform_indices = @transform_5, window_bounds = array<i64: 1, 32>}, {transform_indices = @transform_6, window_bounds = array<i64: 64, 32>}]} {
    %c0 = arith.constant 0 : index
    %c0_0 = arith.constant 0 : index
    %0 = vector.load %arg1[%c0, %c0_0] : memref<64x8xf32, #tpu.memory_space<vmem>>, vector<64x8xf32>
    %c0_1 = arith.constant 0 : index
    %c0_2 = arith.constant 0 : index
    %1 = vector.load %arg2[%c0_1, %c0_2] : memref<64x8xf32, #tpu.memory_space<vmem>>, vector<64x8xf32>
    %2 = arith.addf %0, %1 : vector<64x8xf32>
    %c0_3 = arith.constant 0 : index
    %c0_4 = arith.constant 0 : index
    %3 = vector.load %arg3[%c0_3, %c0_4] : memref<8x16xf32, #tpu.memory_space<vmem>>, vector<8x16xf32>
    %cst = arith.constant dense<0.000000e+00> : vector<64x16xf32>
    %4 = tpu.matmul %2, %3, %cst {dimension_numbers = #tpu.dot_dimension_numbers<[1], [0], [0], [1], [0, 0, 1, 1], [], []>} : vector<64x8xf32>, vector<8x16xf32>, vector<64x16xf32> -> vector<64x16xf32>
    %c0_5 = arith.constant 0 : index
    %c0_6 = arith.constant 0 : index
    %5 = vector.load %arg4[%c0_5, %c0_6] : memref<1x16xf32, #tpu.memory_space<vmem>>, vector<1x16xf32>
    %6 = vector.broadcast %5 : vector<1x16xf32> to vector<64x16xf32>
    %7 = arith.addf %4, %6 : vector<64x16xf32>
    %cst_7 = arith.constant 0.000000e+00 : f32
    %8 = vector.broadcast %cst_7 : f32 to vector<64x16xf32>
    %9 = arith.maximumf %7, %8 : vector<64x16xf32>
    %c0_8 = arith.constant 0 : index
    %c0_9 = arith.constant 0 : index
    %10 = vector.load %arg5[%c0_8, %c0_9] : memref<16x32xf32, #tpu.memory_space<vmem>>, vector<16x32xf32>
    %cst_10 = arith.constant dense<0.000000e+00> : vector<64x32xf32>
    %11 = tpu.matmul %9, %10, %cst_10 {dimension_numbers = #tpu.dot_dimension_numbers<[1], [0], [0], [1], [0, 0, 1, 1], [], []>} : vector<64x16xf32>, vector<16x32xf32>, vector<64x32xf32> -> vector<64x32xf32>
    %c0_11 = arith.constant 0 : index
    %c0_12 = arith.constant 0 : index
    %12 = vector.load %arg6[%c0_11, %c0_12] : memref<1x32xf32, #tpu.memory_space<vmem>>, vector<1x32xf32>
    %13 = vector.broadcast %12 : vector<1x32xf32> to vector<64x32xf32>
    %14 = arith.addf %11, %13 : vector<64x32xf32>
    %cst_13 = arith.constant 0.000000e+00 : f32
    %15 = vector.broadcast %cst_13 : f32 to vector<64x32xf32>
    %16 = arith.maximumf %14, %15 : vector<64x32xf32>
    %c0_14 = arith.constant 0 : index
    %c0_15 = arith.constant 0 : index
    %17 = vector.load %arg7[%c0_14, %c0_15] : memref<64x32xf32, #tpu.memory_space<vmem>>, vector<64x32xf32>
    tpu.vector_store %arg7[%c0_14, %c0_15], %16 {strides = array<i32>} : memref<64x32xf32, #tpu.memory_space<vmem>>, vector<64x32xf32>,
    return
  }
  func.func @transform_0(%arg0: i32) -> (i32, i32) {
    %c0_i32 = arith.constant 0 : i32
    %c0_i32_0 = arith.constant 0 : i32
    return %arg0, %c0_i32 : i32, i32
  }
  func.func @transform_1(%arg0: i32) -> (i32, i32) {
    %c0_i32 = arith.constant 0 : i32
    %c0_i32_0 = arith.constant 0 : i32
    %c0_i32_1 = arith.constant 0 : i32
    return %c0_i32, %c0_i32_0 : i32, i32
  }
  func.func @transform_2(%arg0: i32) -> (i32, i32) {
    %c0_i32 = arith.constant 0 : i32
    %c0_i32_0 = arith.constant 0 : i32
    %c0_i32_1 = arith.constant 0 : i32
    return %c0_i32, %c0_i32_0 : i32, i32
  }
  func.func @transform_3(%arg0: i32) -> (i32, i32) {
    %c0_i32 = arith.constant 0 : i32
    %c0_i32_0 = arith.constant 0 : i32
    %c0_i32_1 = arith.constant 0 : i32
    return %c0_i32, %c0_i32_0 : i32, i32
  }
  func.func @transform_4(%arg0: i32) -> (i32, i32) {
    %c0_i32 = arith.constant 0 : i32
    %c0_i32_0 = arith.constant 0 : i32
    %c0_i32_1 = arith.constant 0 : i32
    return %c0_i32, %c0_i32_0 : i32, i32
  }
  func.func @transform_5(%arg0: i32) -> (i32, i32) {
    %c0_i32 = arith.constant 0 : i32
    %c0_i32_0 = arith.constant 0 : i32
    %c0_i32_1 = arith.constant 0 : i32
    return %c0_i32, %c0_i32_0 : i32, i32
  }
  func.func @transform_6(%arg0: i32) -> (i32, i32) {
    %c0_i32 = arith.constant 0 : i32
    %c0_i32_0 = arith.constant 0 : i32
    return %arg0, %c0_i32 : i32, i32
  }
}

</mosaic_0001>

<llo_original>
// kernel: tpu_custom_call.1
$region0: #{tpu_custom_call.1}
  #allocation0 [shape = 'u32[]', space=smem, size = 0x4, offset = 0x4, fixed_abs, tag = 'smem constant byte address 0x4 - core index']
  #allocation1 [shape = 'u32[72,128]{1,0:T(1,128)}', space=vmem, size = 0x9000, scoped, tag = 'internal scratch']
  %s0 = inlined_call_operand.vmem [shape: f32[64,8], index: 0, kind: input, shape index: {}]
  %s1 = inlined_call_operand.vmem [shape: f32[64,8], index: 1, kind: input, shape index: {}]
  %s2 = inlined_call_operand.vmem [shape: f32[8,16], index: 2, kind: input, shape index: {}]
  %s3 = inlined_call_operand.vmem [shape: f32[1,16], index: 3, kind: input, shape index: {}]
  %s4 = inlined_call_operand.vmem [shape: f32[16,32], index: 4, kind: input, shape index: {}]
  %s5 = inlined_call_operand.vmem [shape: f32[1,32], index: 5, kind: input, shape index: {}]
  %s6 = inlined_call_operand.vmem [shape: f32[64,32], index: 6, kind: output, shape index: {}]
  %s7 = sld [smem:[#allocation0]]
  $region34: #{tpu_custom_call.1} parent=0
    _
  %s9 = ssub.s32 1, %s7
  %s10 = scalar_select 0, %s9, %s7
  // Predicated region
  $region2: #{tpu_custom_call.1} parent=0 // pred_check
    _
  $region3: #{tpu_custom_call.1} parent=0 // pred_check_branch
    %12 = sbr.rel (0) target = $region5
  $region4: #{tpu_custom_call.1} parent=0 // pred_region
    _
  $region5: #{tpu_custom_call.1} parent=0 // pred_fallthru
    _
  // Predicated region
  $region6: #{tpu_custom_call.1} parent=0 // pred_check
    _
  $region7: #{tpu_custom_call.1} parent=0 // pred_check_branch
    %14 = sbr.rel (0) target = $region9
  $region8: #{tpu_custom_call.1} parent=0 // pred_region
    _
  $region9: #{tpu_custom_call.1} parent=0 // pred_fallthru
    _
  // Predicated region
  $region10: #{tpu_custom_call.1} parent=0 // pred_check
    _
  $region11: #{tpu_custom_call.1} parent=0 // pred_check_branch
    %16 = sbr.rel (0) target = $region13
  $region12: #{tpu_custom_call.1} parent=0 // pred_region
    _
  $region13: #{tpu_custom_call.1} parent=0 // pred_fallthru
    _
  // Predicated region
  $region14: #{tpu_custom_call.1} parent=0 // pred_check
    _
  $region15: #{tpu_custom_call.1} parent=0 // pred_check_branch
    %18 = sbr.rel (0) target = $region17
  $region16: #{tpu_custom_call.1} parent=0 // pred_region
    _
  $region17: #{tpu_custom_call.1} parent=0 // pred_fallthru
    _
  // Predicated region
  $region18: #{tpu_custom_call.1} parent=0 // pred_check
    _
  $region19: #{tpu_custom_call.1} parent=0 // pred_check_branch
    %20 = sbr.rel (0) target = $region21
  $region20: #{tpu_custom_call.1} parent=0 // pred_region
    _
  $region21: #{tpu_custom_call.1} parent=0 // pred_fallthru
    _
  // Predicated region
  $region22: #{tpu_custom_call.1} parent=0 // pred_check
    _
  $region23: #{tpu_custom_call.1} parent=0 // pred_check_branch
    %22 = sbr.rel (0) target = $region25
  $region24: #{tpu_custom_call.1} parent=0 // pred_region
    _
  $region25: #{tpu_custom_call.1} parent=0 // pred_fallthru
    _
  %v23 = vld [vmem:[%s0] sm:$0xff]
  %v24 = vld [vmem:[%s0 + $0x8] sm:$0xff]
  %v25 = vld [vmem:[%s0 + $0x10] sm:$0xff]
  %v26 = vld [vmem:[%s0 + $0x18] sm:$0xff]
  %v27 = vld [vmem:[%s0 + $0x20] sm:$0xff]
  %v28 = vld [vmem:[%s0 + $0x28] sm:$0xff]
  %v29 = vld [vmem:[%s0 + $0x30] sm:$0xff]
  %v30 = vld [vmem:[%s0 + $0x38] sm:$0xff]
  %v31 = vld [vmem:[%s1] sm:$0xff]
  %v32 = vld [vmem:[%s1 + $0x8] sm:$0xff]
  %v33 = vld [vmem:[%s1 + $0x10] sm:$0xff]
  %v34 = vld [vmem:[%s1 + $0x18] sm:$0xff]
  %v35 = vld [vmem:[%s1 + $0x20] sm:$0xff]
  %v36 = vld [vmem:[%s1 + $0x28] sm:$0xff]
  %v37 = vld [vmem:[%s1 + $0x30] sm:$0xff]
  %v38 = vld [vmem:[%s1 + $0x38] sm:$0xff]
  %v39 = vadd.f32 %v23, %v31
  %v40 = vadd.f32 %v24, %v32
  %v41 = vadd.f32 %v25, %v33
  %v42 = vadd.f32 %v26, %v34
  %v43 = vadd.f32 %v27, %v35
  %v44 = vadd.f32 %v28, %v36
  %v45 = vadd.f32 %v29, %v37
  %v46 = vadd.f32 %v30, %v38
  %v47 = vld [vmem:[%s2] sm:$0xff]
  %v48 = vld [vmem:[%s3] sm:$0x1]
  %v50 = vperm.slane %v48, 0
  %vm52 = vcmask 64512
  %v54 = vsel %vm52, %v39, 0
  %v57 = vsel %vm52, %v40, 0
  %v60 = vsel %vm52, %v41, 0
  %v63 = vsel %vm52, %v42, 0
  %v66 = vsel %vm52, %v43, 0
  %v69 = vsel %vm52, %v44, 0
  %v72 = vsel %vm52, %v45, 0
  %v75 = vsel %vm52, %v46, 0
  %77 = vmatpush.msra.mxu0 0.0
  %78 = vmatpush.msra.mxu0 0.0
  %79 = vmatpush.msra.mxu0 0.0
  %80 = vmatpush.msra.mxu0 0.0
  %81 = vmatpush.msra.mxu0 0.0
  %82 = vmatpush.msra.mxu0 0.0
  %83 = vmatpush.msra.mxu0 0.0
  %84 = vmatpush.msra.mxu0 0.0
  %85 = vmatpush.msra.mxu0 0.0
  %86 = vmatpush.msra.mxu0 0.0
  %87 = vmatpush.msra.mxu0 0.0
  %88 = vmatpush.msra.mxu0 0.0
  %89 = vmatpush.msra.mxu0 0.0
  %90 = vmatpush.msra.mxu0 0.0
  %91 = vmatpush.msra.mxu0 0.0
  %92 = vmatpush.msra.mxu0 %v47
  %93 = vmatmul.f32.gmra.mxu0 %v54
  %v94 = vpop.f32.mrf.mxu0
  %v95 = vadd.f32 %v50, %v94
  %96 = vmatmul.f32.gmra.mxu0 %v57
  %v97 = vpop.f32.mrf.mxu0
  %v98 = vadd.f32 %v50, %v97
  %99 = vmatmul.f32.gmra.mxu0 %v60
  %v100 = vpop.f32.mrf.mxu0
  %v101 = vadd.f32 %v50, %v100
  %102 = vmatmul.f32.gmra.mxu0 %v63
  %v103 = vpop.f32.mrf.mxu0
  %v104 = vadd.f32 %v50, %v103
  %105 = vmatmul.f32.gmra.mxu0 %v66
  %v106 = vpop.f32.mrf.mxu0
  %v107 = vadd.f32 %v50, %v106
  %108 = vmatmul.f32.gmra.mxu0 %v69
  %v109 = vpop.f32.mrf.mxu0
  %v110 = vadd.f32 %v50, %v109
  %111 = vmatmul.f32.gmra.mxu0 %v72
  %v112 = vpop.f32.mrf.mxu0
  %v113 = vadd.f32 %v50, %v112
  %114 = vmatmul.f32.gmra.mxu0 %v75
  %v115 = vpop.f32.mrf.mxu0
  %v116 = vadd.f32 %v50, %v115
  %117 = vdwg.mxu0
  %v118 = vmax.f32 %v95, 0.0
  %v119 = vmax.f32 %v98, 0.0
  %v120 = vmax.f32 %v101, 0.0
  %v121 = vmax.f32 %v104, 0.0
  %v122 = vmax.f32 %v107, 0.0
  %v123 = vmax.f32 %v110, 0.0
  %v124 = vmax.f32 %v113, 0.0
  %v125 = vmax.f32 %v116, 0.0
  %v126 = vld [vmem:[%s4] sm:$0xff]
  %v127 = vld [vmem:[%s4 + $0x8] sm:$0xff]
  %v128 = vld [vmem:[%s5] sm:$0x1]
  %v130 = vperm.slane %v128, 0
  %vm132 = vcmask 130048
  %v134 = vsel %vm132, %v118, 0
  %v137 = vsel %vm132, %v119, 0
  %v140 = vsel %vm132, %v120, 0
  %v143 = vsel %vm132, %v121, 0
  %v146 = vsel %vm132, %v122, 0
  %v149 = vsel %vm132, %v123, 0
  %v152 = vsel %vm132, %v124, 0
  %v155 = vsel %vm132, %v125, 0
  %157 = vmatpush.msra.mxu0 0.0
  %158 = vmatpush.msra.mxu0 0.0
  %159 = vmatpush.msra.mxu0 0.0
  %160 = vmatpush.msra.mxu0 0.0
  %161 = vmatpush.msra.mxu0 0.0
  %162 = vmatpush.msra.mxu0 0.0
  %163 = vmatpush.msra.mxu0 0.0
  %164 = vmatpush.msra.mxu0 0.0
  %165 = vmatpush.msra.mxu0 0.0
  %166 = vmatpush.msra.mxu0 0.0
  %167 = vmatpush.msra.mxu0 0.0
  %168 = vmatpush.msra.mxu0 0.0
  %169 = vmatpush.msra.mxu0 0.0
  %170 = vmatpush.msra.mxu0 0.0
  %171 = vmatpush.msra.mxu0 %v127
  %172 = vmatpush.msra.mxu0 %v126
  %173 = vmatmul.f32.gmra.mxu0 %v134
  %v174 = vpop.f32.mrf.mxu0
  %v175 = vadd.f32 %v130, %v174
  %176 = vmatmul.f32.gmra.mxu0 %v137
  %v177 = vpop.f32.mrf.mxu0
  %v178 = vadd.f32 %v130, %v177
  %179 = vmatmul.f32.gmra.mxu0 %v140
  %v180 = vpop.f32.mrf.mxu0
  %v181 = vadd.f32 %v130, %v180
  %182 = vmatmul.f32.gmra.mxu0 %v143
  %v183 = vpop.f32.mrf.mxu0
  %v184 = vadd.f32 %v130, %v183
  %185 = vmatmul.f32.gmra.mxu0 %v146
  %v186 = vpop.f32.mrf.mxu0
  %v187 = vadd.f32 %v130, %v186
  %188 = vmatmul.f32.gmra.mxu0 %v149
  %v189 = vpop.f32.mrf.mxu0
  %v190 = vadd.f32 %v130, %v189
  %191 = vmatmul.f32.gmra.mxu0 %v152
  %v192 = vpop.f32.mrf.mxu0
  %v193 = vadd.f32 %v130, %v192
  %194 = vmatmul.f32.gmra.mxu0 %v155
  %v195 = vpop.f32.mrf.mxu0
  %v196 = vadd.f32 %v130, %v195
  %197 = vdwg.mxu0
  %v198 = vmax.f32 %v175, 0.0
  %v199 = vmax.f32 %v178, 0.0
  %v200 = vmax.f32 %v181, 0.0
  %v201 = vmax.f32 %v184, 0.0
  %v202 = vmax.f32 %v187, 0.0
  %v203 = vmax.f32 %v190, 0.0
  %v204 = vmax.f32 %v193, 0.0
  %v205 = vmax.f32 %v196, 0.0
  %vm206 = vcmask 261120
  %207 = vst.msk [vmem:[%s6] sm:$0xff] %vm206, %v198
  %208 = vst.msk [vmem:[%s6 + $0x8] sm:$0xff] %vm206, %v199
  %209 = vst.msk [vmem:[%s6 + $0x10] sm:$0xff] %vm206, %v200
  %210 = vst.msk [vmem:[%s6 + $0x18] sm:$0xff] %vm206, %v201
  %211 = vst.msk [vmem:[%s6 + $0x20] sm:$0xff] %vm206, %v202
  %212 = vst.msk [vmem:[%s6 + $0x28] sm:$0xff] %vm206, %v203
  %213 = vst.msk [vmem:[%s6 + $0x30] sm:$0xff] %vm206, %v204
  %214 = vst.msk [vmem:[%s6 + $0x38] sm:$0xff] %vm206, %v205
  // Predicated region
  $region26: #{tpu_custom_call.1} parent=0 // pred_check
    _
  $region27: #{tpu_custom_call.1} parent=0 // pred_check_branch
    %216 = sbr.rel (0) target = $region29
  $region28: #{tpu_custom_call.1} parent=0 // pred_region
    _
  $region29: #{tpu_custom_call.1} parent=0 // pred_fallthru
    _
  // Predicated region
  $region30: #{tpu_custom_call.1} parent=0 // pred_check
    _
  $region31: #{tpu_custom_call.1} parent=0 // pred_check_branch
    %218 = sbr.rel (0) target = $region33
  $region32: #{tpu_custom_call.1} parent=0 // pred_region
    _
  $region33: #{tpu_custom_call.1} parent=0 // pred_fallthru
    _

</llo_original>
